<compile_context>
chip_gen: v7x
topology: tpu7x:2x2x1
jax: 0.10.0
libtpu: 0.0.40
codegen_flags: <defaults>
</compile_context>

<pallas_src>
import math

import jax
import jax.numpy as jnp
from jax.experimental import pallas as pl
from jax.experimental.pallas import tpu as pltpu

_LANE = 128


def _round_up(a: int, b: int) -> int:
    return ((a + b - 1) // b) * b


def _fused_affine_kernel(x_ref, w_ref, b_ref, o_ref):
    """One fused 10->2 affine pass over a tile of rows.

    x_ref: [TM, in_f]    natural HBM-layout rows (features on lanes)
    w_ref: [in_f, out_f] fused weight (w2 @ w1).T, resident in VMEM
    b_ref: [out_f]       fused bias  w2 @ b1 + b2, in SMEM (scalars)
    o_ref: [out_f, TM]   lane-dense output (rows on lanes)
    """
    # One XLU transpose puts the big M dimension on lanes; everything after it
    # is lane-dense: VPU broadcast-muls, XLU sublane reductions, full-row vst.
    x_t = x_ref[...].T                                   # [in_f, TM]
    out_f = o_ref.shape[0]
    for o in range(out_f):                               # out_f == 2: static unroll
        acc = jnp.sum(x_t * w_ref[:, o:o + 1], axis=0, keepdims=True)   # [1, TM]
        o_ref[o:o + 1, :] = (acc + b_ref[o]).astype(o_ref.dtype)        # direct row store


def _choose_tiling(m: int, tile_m_target: int) -> tuple[int, int]:
    """Pick (tile_m, grid_m) for the row dimension.

    - m <= 512: a single exact-size tile (block dims equal the full array
      dims -> no padding, no ragged block at all).
    - larger m: >= 2 tiles (even count, so the "parallel" axis balances the
      two v7x TensorCores); tile is a multiple of 128 and capped so the
      lane-padded [TM, 128] double-buffered input stays within VMEM while
      each grid step still moves ~0.5 MiB of HBM (>> 0.35 us step overhead).
      Row padding is never materialised: any ragged last block is handled by
      Pallas (padded reads, masked writes).
    """
    if m <= 4 * _LANE:
        return m, 1
    n_tiles = max(pl.cdiv(m, tile_m_target), 2)
    if n_tiles % 2:
        n_tiles += 1                                     # balanced across 2 TCs (v7x)
    tile_m = _round_up(pl.cdiv(m, n_tiles), _LANE)
    grid_m = pl.cdiv(m, tile_m)
    return tile_m, grid_m


def simple_model_forward(x, w1, b1, w2, b2, *, tile_m_target=16384):
    """x: [..., 10] float32 -> [..., 2] float32, same math as fc2(fc1(x))."""
    orig_shape = x.shape
    in_f = orig_shape[-1]
    assert in_f == w1.shape[1], "last dim of x must equal fc1 in_features"
    out_f = w2.shape[0]
    batch_dims = orig_shape[:-1]

    m = math.prod(batch_dims)
    if m == 0:  # empty batch: nothing to launch
        return jnp.zeros((*batch_dims, out_f), dtype=jnp.float32)

    # ---- algebraic fusion of the two bias-linears (no nonlinearity between) --
    w_fused = (w2 @ w1).T.astype(jnp.float32)            # [10, 2]
    b_fused = (w2 @ b1 + b2).astype(jnp.float32)         # [2]

    x2d = x.reshape(m, in_f).astype(jnp.float32)         # free reshape, no copy

    tm, grid_m = _choose_tiling(m, tile_m_target)

    out_t = pl.pallas_call(
        _fused_affine_kernel,
        out_shape=jax.ShapeDtypeStruct((out_f, m), jnp.float32),
        grid=(grid_m,),
        in_specs=[
            # natural, contiguous [tm, 10] row blocks straight from HBM
            pl.BlockSpec((tm, in_f), lambda j: (j, 0)),
            # tiny fused weight, resident across the grid
            pl.BlockSpec((in_f, out_f), lambda j: (0, 0)),
            # fused bias: 2 scalars in SMEM
            pl.BlockSpec(memory_space=pltpu.MemorySpace.SMEM),
        ],
        # lane-dense [2, tm] output tile (M on lanes -> unmasked full-row vst)
        out_specs=pl.BlockSpec((out_f, tm), lambda j: (0, j)),
        compiler_params=pltpu.CompilerParams(
            dimension_semantics=("parallel",),
            vmem_limit_bytes=32 * 1024 * 1024,
        ),
        cost_estimate=pl.CostEstimate(
            flops=2 * m * in_f * out_f,
            transcendentals=0,
            # bytes actually touched: x read, y written, fused weight + bias
            bytes_accessed=4 * (m * in_f + m * out_f + in_f * out_f + out_f),
        ),
    )(x2d, w_fused, b_fused)

    # Only remaining layout op: [2, m] -> [m, 2] (8 B/row each way vs. 40 B/row
    # of input). A consumer accepting the transposed layout could skip it.
    return out_t.T.reshape(*batch_dims, out_f)


def init_params(key):
    """Deterministic init matching nn.Linear shapes: fc1 (5,10)+(5,), fc2 (2,5)+(2,)."""
    k1, k2, k3, k4 = jax.random.split(key, 4)
    bound1 = 1.0 / jnp.sqrt(10.0)
    bound2 = 1.0 / jnp.sqrt(5.0)
    w1 = jax.random.uniform(k1, (5, 10), jnp.float32, -bound1, bound1)
    b1 = jax.random.uniform(k2, (5,), jnp.float32, -bound1, bound1)
    w2 = jax.random.uniform(k3, (2, 5), jnp.float32, -bound2, bound2)
    b2 = jax.random.uniform(k4, (2,), jnp.float32, -bound2, bound2)
    return w1, b1, w2, b2


def _reference(x, w1, b1, w2, b2):
    return (x @ w1.T + b1) @ w2.T + b2


if __name__ == "__main__":
    key = jax.random.PRNGKey(0)
    k_x, k_x2, k_p = jax.random.split(key, 3)
    w1, b1, w2, b2 = init_params(k_p)

    # Shapes consistent with the module's forward: last dim must equal fc1's
    # in_features (10).
    batch_size, seq_len, in_dim = 1, 3, 10
    x = jax.random.normal(k_x, (batch_size, seq_len, in_dim), jnp.float32)

    out = jax.block_until_ready(simple_model_forward(x, w1, b1, w2, b2))
    ref = _reference(x, w1, b1, w2, b2)
    assert out.shape == (batch_size, seq_len, 2)
    assert jnp.allclose(out, ref, atol=1e-5, rtol=1e-5), float(jnp.max(jnp.abs(out - ref)))

    # Second check: enough rows (m = 8*128 = 1024) to take the multi-tile
    # "parallel" path (2 tiles of 512 rows).
    x2 = jax.random.normal(k_x2, (8, 128, in_dim), jnp.float32)
    out2 = jax.block_until_ready(simple_model_forward(x2, w1, b1, w2, b2))
    ref2 = _reference(x2, w1, b1, w2, b2)
    assert out2.shape == (8, 128, 2)
    assert jnp.allclose(out2, ref2, atol=1e-5, rtol=1e-5), float(jnp.max(jnp.abs(out2 - ref2)))

    print("KERNEL_OK")
</pallas_src>

<mosaic_0001>
module attributes {stable_mosaic.version = 11 : i64} {
  func.func @_fused_affine_kernel(%arg0: i32, %arg1: memref<3x10xf32, #tpu.memory_space<vmem>>, %arg2: memref<10x2xf32, #tpu.memory_space<vmem>>, %arg3: memref<2xf32, #tpu.memory_space<smem>>, %arg4: memref<2x3xf32, #tpu.memory_space<vmem>>) attributes {dimension_semantics = [#tpu.dimension_semantics<parallel>], iteration_bounds = array<i64: 1>, scalar_prefetch = 0 : i64, scratch_operands = 0 : i64, tpu.core_type = #tpu.core_type<tc>, window_params = [{transform_indices = @transform_0, window_bounds = array<i64: 3, 10>}, {pipeline_mode = #tpu.pipeline_mode<synchronous>, transform_indices = @transform_1, window_bounds = array<i64: 10, 2>}, {transform_indices = @transform_2, window_bounds = array<i64: 2>}, {transform_indices = @transform_3, window_bounds = array<i64: 2, 3>}]} {
    %c0 = arith.constant 0 : index
    %c0_0 = arith.constant 0 : index
    %0 = vector.load %arg1[%c0, %c0_0] : memref<3x10xf32, #tpu.memory_space<vmem>>, vector<3x10xf32>
    %1 = tpu.transpose %0, [1, 0] : vector<3x10xf32> -> vector<10x3xf32>
    %c0_1 = arith.constant 0 : index
    %c0_2 = arith.constant 0 : index
    %2 = vector.load %arg2[%c0_1, %c0_2] : memref<10x2xf32, #tpu.memory_space<vmem>>, vector<10x1xf32>
    %3 = vector.broadcast %2 : vector<10x1xf32> to vector<10x3xf32>
    %4 = arith.mulf %1, %3 : vector<10x3xf32>
    %cst = arith.constant dense<0.000000e+00> : vector<3xf32>
    %5 = vector.multi_reduction <add>, %4, %cst [0] : vector<10x3xf32> to vector<3xf32>
    %6 = vector.shape_cast %5 : vector<3xf32> to vector<1x3xf32>
    %c0_3 = arith.constant 0 : index
    %7 = memref.load %arg3[%c0_3] : memref<2xf32, #tpu.memory_space<smem>>
    %8 = vector.broadcast %7 : f32 to vector<1x3xf32>
    %9 = arith.addf %6, %8 : vector<1x3xf32>
    %c0_4 = arith.constant 0 : index
    %c0_5 = arith.constant 0 : index
    %10 = vector.load %arg4[%c0_4, %c0_5] : memref<2x3xf32, #tpu.memory_space<vmem>>, vector<1x3xf32>
    tpu.vector_store %arg4[%c0_4, %c0_5], %9 {strides = array<i32>} : memref<2x3xf32, #tpu.memory_space<vmem>>, vector<1x3xf32>,
    %c0_6 = arith.constant 0 : index
    %c1 = arith.constant 1 : index
    %11 = vector.load %arg2[%c0_6, %c1] : memref<10x2xf32, #tpu.memory_space<vmem>>, vector<10x1xf32>
    %12 = vector.broadcast %11 : vector<10x1xf32> to vector<10x3xf32>
    %13 = arith.mulf %1, %12 : vector<10x3xf32>
    %cst_7 = arith.constant dense<0.000000e+00> : vector<3xf32>
    %14 = vector.multi_reduction <add>, %13, %cst_7 [0] : vector<10x3xf32> to vector<3xf32>
    %15 = vector.shape_cast %14 : vector<3xf32> to vector<1x3xf32>
    %c1_8 = arith.constant 1 : index
    %16 = memref.load %arg3[%c1_8] : memref<2xf32, #tpu.memory_space<smem>>
    %17 = vector.broadcast %16 : f32 to vector<1x3xf32>
    %18 = arith.addf %15, %17 : vector<1x3xf32>
    %c1_9 = arith.constant 1 : index
    %c0_10 = arith.constant 0 : index
    %19 = vector.load %arg4[%c1_9, %c0_10] : memref<2x3xf32, #tpu.memory_space<vmem>>, vector<1x3xf32>
    tpu.vector_store %arg4[%c1_9, %c0_10], %18 {strides = array<i32>} : memref<2x3xf32, #tpu.memory_space<vmem>>, vector<1x3xf32>,
    return
  }
  func.func @transform_0(%arg0: i32) -> (i32, i32) {
    %c0_i32 = arith.constant 0 : i32
    %c0_i32_0 = arith.constant 0 : i32
    return %arg0, %c0_i32 : i32, i32
  }
  func.func @transform_1(%arg0: i32) -> (i32, i32) {
    %c0_i32 = arith.constant 0 : i32
    %c0_i32_0 = arith.constant 0 : i32
    %c0_i32_1 = arith.constant 0 : i32
    return %c0_i32, %c0_i32_0 : i32, i32
  }
  func.func @transform_2(%arg0: i32) -> i32 {
    %c0_i32 = arith.constant 0 : i32
    %c0_i32_0 = arith.constant 0 : i32
    return %c0_i32 : i32
  }
  func.func @transform_3(%arg0: i32) -> (i32, i32) {
    %c0_i32 = arith.constant 0 : i32
    %c0_i32_0 = arith.constant 0 : i32
    return %c0_i32, %arg0 : i32, i32
  }
}

</mosaic_0001>

<llo_original>
// kernel: tpu_custom_call.1
$region0: #{tpu_custom_call.1}
  #allocation0 [shape = 'u32[]', space=smem, size = 0x4, offset = 0x4, fixed_abs, tag = 'smem constant byte address 0x4 - core index']
  #allocation1 [shape = 'u32[144,128]{1,0:T(1,128)}', space=vmem, size = 0x12000, scoped, tag = 'internal scratch']
  %s0 = inlined_call_operand.vmem [shape: f32[3,10], index: 0, kind: input, shape index: {}]
  %s1 = inlined_call_operand.vmem [shape: f32[10,2], index: 1, kind: input, shape index: {}]
  %s2 = inlined_call_operand.vmem [shape: f32[2], index: 2, kind: input, shape index: {}]
  %s3 = inlined_call_operand.hbm [shape: f32[2,3], index: 3, kind: output, shape index: {}]
  %s4 = sld [smem:[#allocation0]]
  $region26: #{tpu_custom_call.1} parent=0
    _
  %s6 = ssub.s32 1, %s4
  %s7 = scalar_select 0, %s6, %s4
  $region1: #{tpu_custom_call.1} parent=0
    #allocation2 [shape = 'u8[512]{0}', space=smem, size = 0x200, scoped, tag = 'input window, operand 2, single buffered']
    #allocation3 [shape = 's32[1]{0}', space=sflag, size = 0x4, scoped, tag = 'scoped memory for tpu_custom_call.1']
    #allocation4 [shape = 's32[1]{0}', space=sflag, size = 0x4, scoped, tag = 'scoped memory for tpu_custom_call.1']
    #allocation5 [shape = 'u8[1024]{0}', space=vmem, size = 0x400, scoped, tag = 'output window, operand 0, single buffered']
    %8 = vsyncpa [#allocation4], 0
    %9 = vsyncpa [#allocation3], 0
    // Predicated region
    $region2: #{tpu_custom_call.1} parent=1 // pred_check
      _
    $region3: #{tpu_custom_call.1} parent=1 // pred_check_branch
      %11 = sbr.rel (0) target = $region5
    $region4: #{tpu_custom_call.1} parent=1 // pred_region
      _
    $region5: #{tpu_custom_call.1} parent=1 // pred_fallthru
      _
    // Predicated region
    $region6: #{tpu_custom_call.1} parent=1 // pred_check
      _
    $region7: #{tpu_custom_call.1} parent=1 // pred_check_branch
      %13 = sbr.rel (0) target = $region9
    $region8: #{tpu_custom_call.1} parent=1 // pred_region
      _
    $region9: #{tpu_custom_call.1} parent=1 // pred_fallthru
      _
    // Predicated region
    $region10: #{tpu_custom_call.1} parent=1 // pred_check
      _
    $region11: #{tpu_custom_call.1} parent=1 // pred_check_branch
      %15 = sbr.rel (0) target = $region13
    $region12: #{tpu_custom_call.1} parent=1 // pred_region
      %s17 = ssub.s32 16, 16
      %18 = vsyncadd [#allocation4], %s17
      %s20 = sshll.u32 %s2, 4
      %s21 = int_to_ptr.vmem [resolvable:$true] %s20
      %23 = dma.vmem_to_smem %s21, 16, [#allocation2], [#allocation4]
    $region13: #{tpu_custom_call.1} parent=1 // pred_fallthru
      _
    // Predicated region
    $region14: #{tpu_custom_call.1} parent=1 // pred_check
      _
    $region15: #{tpu_custom_call.1} parent=1 // pred_check_branch
      %25 = sbr.rel (0) target = $region17
    $region16: #{tpu_custom_call.1} parent=1 // pred_region
      %26 = dma.done [#allocation4], 16
    $region17: #{tpu_custom_call.1} parent=1 // pred_fallthru
      _
    %27 = sfence
    %v28 = vld [vmem:[%s0] sm:$0x7]
    %29 = vxpose.xlu0.b32.start [1/16] %v28, 128
    %30 = vxpose.xlu0.b32.cont [2/16] 0.0, 128
    %31 = vxpose.xlu0.b32.cont [3/16] 0.0, 128
    %32 = vxpose.xlu0.b32.cont [4/16] 0.0, 128
    %33 = vxpose.xlu0.b32.cont [5/16] 0.0, 128
    %34 = vxpose.xlu0.b32.cont [6/16] 0.0, 128
    %35 = vxpose.xlu0.b32.cont [7/16] 0.0, 128
    %36 = vxpose.xlu0.b32.cont [8/16] 0.0, 128
    %37 = vxpose.xlu0.b32.cont [9/16] 0.0, 128
    %38 = vxpose.xlu0.b32.cont [10/16] 0.0, 128
    %39 = vxpose.xlu0.b32.cont [11/16] 0.0, 128
    %40 = vxpose.xlu0.b32.cont [12/16] 0.0, 128
    %41 = vxpose.xlu0.b32.cont [13/16] 0.0, 128
    %42 = vxpose.xlu0.b32.cont [14/16] 0.0, 128
    %43 = vxpose.xlu0.b32.cont [15/16] 0.0, 128
    %44 = vxpose.xlu0.b32.end [16/16] 0.0, 128
    %v45 = vpop.trf.xlu0
    %v46 = vpop.trf.xlu0
    %v47 = vpop.trf.xlu0
    %v48 = vpop.trf.xlu0
    %v49 = vpop.trf.xlu0
    %v50 = vpop.trf.xlu0
    %v51 = vpop.trf.xlu0
    %v52 = vpop.trf.xlu0
    %v53 = vpop.trf.xlu0
    %v54 = vpop.trf.xlu0
    %v55 = vpop.trf.xlu0
    %v56 = vpop.trf.xlu0
    %v57 = vpop.trf.xlu0
    %v58 = vpop.trf.xlu0
    %v59 = vpop.trf.xlu0
    %v60 = vpop.trf.xlu0
    %v61 = vld [vmem:[%s1] sm:$0xff]
    %v62 = vld [vmem:[%s1 + $0x8] sm:$0x3]
    %64 = vset.pattern.permute.xlu0 0
    %65 = vperm.xlu0 %64, %v61
    %v66 = vpop.permute.xlu0 %65
    %69 = vset.pattern.permute.xlu0 0
    %70 = vperm.xlu0 %69, %v62
    %v71 = vpop.permute.xlu0 %70
    %v73 = vmul.f32 %v45, %v66
    %v74 = vmul.f32 %v46, %v71
    %vm75 = vcmask 23552
    %v76 = vsel %vm75, %v73, 0.0
    %vm77 = vcmask 17408
    %v78 = vsel %vm77, %v74, 0.0
    %v79 = vadd.f32 %v76, %v78
    %v80 = vrot.slane %v79, 4
    %v81 = vadd.f32 %v79, %v80
    %v82 = vrot.slane %v81, 2
    %v83 = vadd.f32 %v81, %v82
    %v84 = vrot.slane %v83, 1
    %v85 = vadd.f32 %v83, %v84
    %s86 = sld [smem:[#allocation2]]
    %v87 = vstv %s86
    %v88 = vadd.f32 %v85, %v87
    %vm89 = vcmask 16384
    %90 = vst.msk [vmem:[#allocation5] sm:$0x1] %vm89, %v88
    %v91 = vld [vmem:[%s1] sm:$0xff]
    %v92 = vld [vmem:[%s1 + $0x8] sm:$0x3]
    %94 = vset.pattern.permute.xlu0 1
    %95 = vperm.xlu0 %94, %v91
    %v96 = vpop.permute.xlu0 %95
    %99 = vset.pattern.permute.xlu0 1
    %100 = vperm.xlu0 %99, %v92
    %v101 = vpop.permute.xlu0 %100
    %v103 = vmul.f32 %v45, %v96
    %v104 = vmul.f32 %v46, %v101
    %v105 = vsel %vm75, %v103, 0.0
    %v106 = vsel %vm77, %v104, 0.0
    %v107 = vadd.f32 %v105, %v106
    %v108 = vrot.slane %v107, 4
    %v109 = vadd.f32 %v107, %v108
    %v110 = vrot.slane %v109, 2
    %v111 = vadd.f32 %v109, %v110
    %v112 = vrot.slane %v111, 1
    %v113 = vadd.f32 %v111, %v112
    %s114 = sld [smem:[#allocation2 + $0x1]]
    %v115 = vstv %s114
    %v116 = vadd.f32 %v113, %v115
    %117 = vst.msk [vmem:[#allocation5 + $0x1] sm:$0x1] %vm89, %v116
    // Predicated region
    $region18: #{tpu_custom_call.1} parent=1 // pred_check
      _
    $region19: #{tpu_custom_call.1} parent=1 // pred_check_branch
      %119 = sbr.rel (0) target = $region21
    $region20: #{tpu_custom_call.1} parent=1 // pred_region
      %s121 = ssub.s32 32, 32
      %122 = vsyncadd [#allocation3], %s121
      %s124 = sshll.u32 [#allocation5], 4
      %s125 = int_to_ptr.vmem [resolvable:$true] %s124
      %127 = dma.vmem_to_hbm [thread:$0]  %s125, 32, %s3, [#allocation3]
    $region21: #{tpu_custom_call.1} parent=1 // pred_fallthru
      _
    // Predicated region
    $region22: #{tpu_custom_call.1} parent=1 // pred_check
      _
    $region23: #{tpu_custom_call.1} parent=1 // pred_check_branch
      %129 = sbr.rel (0) target = $region25
    $region24: #{tpu_custom_call.1} parent=1 // pred_region
      %130 = dma.done [#allocation3], 32
    $region25: #{tpu_custom_call.1} parent=1 // pred_fallthru
      _
    %131 = vsyncpa [#allocation3], 1
    %132 = vsyncpa [#allocation4], 1

</llo_original>
